<compile_context>
chip_gen: v7x
topology: tpu7x:2x2x1
jax: 0.10.0
libtpu: 0.0.40
codegen_flags: <defaults>
</compile_context>

<pallas_src>
import math

import jax
import jax.numpy as jnp
from jax.experimental import pallas as pl
from jax.experimental.pallas import tpu as pltpu


def layer_scale_kernel(x_ref, s_ref, b_ref, o_ref):
    # x_ref: (rb, HW)  rows = flattened (n, c) pairs, lanes = flattened spatial
    # s_ref: (rb, 1)   per-row scale  (weight[row % C])
    # b_ref: (rb, 1)   per-row bias   (bias[row % C])
    x = x_ref[...].astype(jnp.float32)
    y = x * s_ref[...] + b_ref[...]        # f32 FMA on the VPU, hidden under DMA
    o_ref[...] = y.astype(o_ref.dtype)     # narrow only on the store


def _vmem_params():
    """Return (vmem_limit_bytes, per-block byte target), adapted to the chip."""
    try:
        cap = int(pltpu.get_tpu_info().vmem_capacity_bytes)
    except Exception:
        cap = 0
    if cap <= 0:
        cap = 128 << 20  # v5e/v6e physical VMEM (conservative fallback)
    # Leave >=16 MiB of headroom for compiler scratch / semaphores.  Never ask
    # for more than 64 MiB (64 MiB is ALL of v7x's physical VMEM).
    vmem_limit = min(64 << 20, max(16 << 20, cap - (16 << 20)))
    # v7x (~3.2 TB/s HBM) amortizes the ~0.35 us per-step overhead better with
    # ~8 MiB blocks; v5e/v6e are already near roofline with 4 MiB blocks.
    target_bytes = (8 << 20) if cap <= (64 << 20) else (4 << 20)
    return vmem_limit, target_bytes


def _choose_row_block(total_rows, unit, hw_bytes, target_bytes, vmem_budget,
                      min_steps=4, require_divisor=True):
    """Pick a row (sublane) block size in multiples of `unit`.

    Ensures: >= min_steps grid steps when possible, block + double buffers fit
    the VMEM budget, and (optionally) the block evenly divides total_rows.
    """
    if total_rows <= unit:
        return total_rows
    # Per-row VMEM cost: double-buffered x + out tiles (2 * 2 * hw_bytes) plus
    # the (row, 1) f32 scale/bias blocks padded to 128 lanes (2 * 2 * 512 B).
    per_row_vmem = 4 * hw_bytes + 2048
    units_total = total_rows // unit
    rb_units = max(1, target_bytes // max(1, unit * hw_bytes))
    # Guarantee multiple grid steps so the pipeline has something to overlap.
    rb_units = min(rb_units, max(1, units_total // min_steps))
    # Never let one block (with its double buffers) bust the VMEM budget.
    rb_units = min(rb_units, max(1, vmem_budget // max(1, per_row_vmem * unit)))
    if require_divisor:
        while rb_units > 1 and units_total % rb_units != 0:
            rb_units -= 1
    return rb_units * unit


def layer_scale(x, weight, bias):
    """x: (N, C, H, W); weight: (C, 1, 1, 1); bias: (C,). Returns (N, C, H, W)."""
    N, C, H, W = x.shape
    HW = H * W
    R = N * C

    # Flatten so sublanes are fully packed and HW sits on the lane axis.
    x2 = x.reshape(R, HW)
    hw_bytes = HW * jnp.dtype(x.dtype).itemsize

    vmem_limit, target_bytes = _vmem_params()
    vmem_budget = (vmem_limit * 3) // 4  # headroom inside the scoped limit

    wc = weight.reshape(C).astype(jnp.float32)
    bc = bias.reshape(C).astype(jnp.float32)

    unit = (8 * C) // math.gcd(8, C)  # lcm(8, C): 8-aligned and C-periodic

    if R % unit == 0:
        # Main path: rb is a multiple of C, so the per-row scale/bias pattern
        # is identical for every block -> one resident (rb, 1) block, loaded
        # once (constant index_map), no per-step parameter DMAs.
        rb = _choose_row_block(R, unit, hw_bytes, target_bytes, vmem_budget,
                               require_divisor=True)
        grid = (R // rb,)
        scale_arg = jnp.tile(wc, rb // C).reshape(rb, 1)
        bias_arg = jnp.tile(bc, rb // C).reshape(rb, 1)
        param_index_map = lambda i: (0, 0)          # resident in VMEM
    else:
        # Fallback for awkward R: stream per-row params alongside x; allow a
        # masked ragged last block instead of one VMEM-busting whole-array block.
        rb = _choose_row_block(R, 8, hw_bytes, target_bytes, vmem_budget,
                               require_divisor=False)
        grid = (pl.cdiv(R, rb),)
        scale_arg = jnp.tile(wc, N).reshape(R, 1)
        bias_arg = jnp.tile(bc, N).reshape(R, 1)
        param_index_map = lambda i: (i, 0)          # streamed with x

    out = pl.pallas_call(
        layer_scale_kernel,
        out_shape=jax.ShapeDtypeStruct((R, HW), x.dtype),
        grid_spec=pltpu.PrefetchScalarGridSpec(
            num_scalar_prefetch=0,
            grid=grid,
            in_specs=[
                pl.BlockSpec((rb, HW), lambda i: (i, 0)),
                pl.BlockSpec((rb, 1), param_index_map),
                pl.BlockSpec((rb, 1), param_index_map),
            ],
            out_specs=pl.BlockSpec((rb, HW), lambda i: (i, 0)),
        ),
        compiler_params=pltpu.CompilerParams(
            dimension_semantics=("parallel",),
            vmem_limit_bytes=vmem_limit,
        ),
    )(x2, scale_arg, bias_arg)
    return out.reshape(N, C, H, W)


def layer_scale_reference(x, weight, bias):
    """Pure-JAX reference matching F.conv2d(x, weight, bias, groups=C)."""
    C = x.shape[1]
    w = weight.reshape(1, C, 1, 1)
    b = bias.reshape(1, C, 1, 1)
    return x * w + b


if __name__ == "__main__":
    # Small shapes consistent with the module: batch=2, channels=4, 16x16 spatial.
    N, C, H, W = 2, 4, 16, 16

    key = jax.random.PRNGKey(0)
    kx, kw, kb = jax.random.split(key, 3)

    x = jax.random.normal(kx, (N, C, H, W), dtype=jnp.float32)
    # Parameters shaped like the module's: weight (C,1,1,1) init ~1e-5, bias (C,).
    weight = (jnp.ones((C, 1, 1, 1), dtype=jnp.float32) * 1e-5
              + jax.random.normal(kw, (C, 1, 1, 1), dtype=jnp.float32) * 0.01)
    bias = jax.random.normal(kb, (C,), dtype=jnp.float32) * 0.1

    out = layer_scale(x, weight, bias)
    out = jax.block_until_ready(out)

    ref = layer_scale_reference(x, weight, bias)
    assert out.shape == (N, C, H, W)
    assert jnp.allclose(out, ref, atol=1e-6, rtol=1e-6), "mismatch vs reference"

    print("KERNEL_OK")
</pallas_src>

<mosaic_0001>
module attributes {stable_mosaic.version = 11 : i64} {
  func.func @layer_scale_kernel(%arg0: i32, %arg1: memref<8x256xf32, #tpu.memory_space<vmem>>, %arg2: memref<8x1xf32, #tpu.memory_space<vmem>>, %arg3: memref<8x1xf32, #tpu.memory_space<vmem>>, %arg4: memref<8x256xf32, #tpu.memory_space<vmem>>) attributes {dimension_semantics = [#tpu.dimension_semantics<parallel>], iteration_bounds = array<i64: 1>, scalar_prefetch = 0 : i64, scratch_operands = 0 : i64, tpu.core_type = #tpu.core_type<tc>, window_params = [{transform_indices = @transform_0, window_bounds = array<i64: 8, 256>}, {pipeline_mode = #tpu.pipeline_mode<synchronous>, transform_indices = @transform_1, window_bounds = array<i64: 8, 1>}, {pipeline_mode = #tpu.pipeline_mode<synchronous>, transform_indices = @transform_2, window_bounds = array<i64: 8, 1>}, {transform_indices = @transform_3, window_bounds = array<i64: 8, 256>}]} {
    %c0 = arith.constant 0 : index
    %c0_0 = arith.constant 0 : index
    %0 = vector.load %arg1[%c0, %c0_0] : memref<8x256xf32, #tpu.memory_space<vmem>>, vector<8x256xf32>
    %c0_1 = arith.constant 0 : index
    %c0_2 = arith.constant 0 : index
    %1 = vector.load %arg2[%c0_1, %c0_2] : memref<8x1xf32, #tpu.memory_space<vmem>>, vector<8x1xf32>
    %2 = vector.broadcast %1 : vector<8x1xf32> to vector<8x256xf32>
    %3 = arith.mulf %0, %2 : vector<8x256xf32>
    %c0_3 = arith.constant 0 : index
    %c0_4 = arith.constant 0 : index
    %4 = vector.load %arg3[%c0_3, %c0_4] : memref<8x1xf32, #tpu.memory_space<vmem>>, vector<8x1xf32>
    %5 = vector.broadcast %4 : vector<8x1xf32> to vector<8x256xf32>
    %6 = arith.addf %3, %5 : vector<8x256xf32>
    %c0_5 = arith.constant 0 : index
    %c0_6 = arith.constant 0 : index
    %7 = vector.load %arg4[%c0_5, %c0_6] : memref<8x256xf32, #tpu.memory_space<vmem>>, vector<8x256xf32>
    tpu.vector_store %arg4[%c0_5, %c0_6], %6 {strides = array<i32>} : memref<8x256xf32, #tpu.memory_space<vmem>>, vector<8x256xf32>,
    return
  }
  func.func @transform_0(%arg0: i32) -> (i32, i32) {
    %c0_i32 = arith.constant 0 : i32
    %c0_i32_0 = arith.constant 0 : i32
    return %arg0, %c0_i32 : i32, i32
  }
  func.func @transform_1(%arg0: i32) -> (i32, i32) {
    %c0_i32 = arith.constant 0 : i32
    %c0_i32_0 = arith.constant 0 : i32
    %c0_i32_1 = arith.constant 0 : i32
    return %c0_i32, %c0_i32_0 : i32, i32
  }
  func.func @transform_2(%arg0: i32) -> (i32, i32) {
    %c0_i32 = arith.constant 0 : i32
    %c0_i32_0 = arith.constant 0 : i32
    %c0_i32_1 = arith.constant 0 : i32
    return %c0_i32, %c0_i32_0 : i32, i32
  }
  func.func @transform_3(%arg0: i32) -> (i32, i32) {
    %c0_i32 = arith.constant 0 : i32
    %c0_i32_0 = arith.constant 0 : i32
    return %arg0, %c0_i32 : i32, i32
  }
}

</mosaic_0001>

<llo_original>
// kernel: tpu_custom_call.1
$region0: #{tpu_custom_call.1}
  #allocation0 [shape = 'u32[]', space=smem, size = 0x4, offset = 0x4, fixed_abs, tag = 'smem constant byte address 0x4 - core index']
  #allocation1 [shape = 'u32[144,128]{1,0:T(1,128)}', space=vmem, size = 0x12000, scoped, tag = 'internal scratch']
  %s0 = inlined_call_operand.hbm [shape: f32[8,256], index: 0, kind: input, shape index: {}]
  %s1 = inlined_call_operand.hbm [shape: f32[8,1], index: 1, kind: input, shape index: {}]
  %s2 = inlined_call_operand.hbm [shape: f32[8,1], index: 2, kind: input, shape index: {}]
  %s3 = inlined_call_operand.hbm [shape: f32[8,256], index: 3, kind: output, shape index: {}]
  %s4 = sld [smem:[#allocation0]]
  $region34: #{tpu_custom_call.1} parent=0
    _
  %s6 = ssub.s32 1, %s4
  %s7 = scalar_select 0, %s6, %s4
  $region1: #{tpu_custom_call.1} parent=0
    #allocation2 [shape = 'u8[8192]{0}', space=vmem, size = 0x2000, scoped, tag = 'input window, operand 0, single buffered']
    #allocation3 [shape = 's32[1]{0}', space=sflag, size = 0x4, scoped, tag = 'scoped memory for tpu_custom_call.1']
    #allocation4 [shape = 's32[1]{0}', space=sflag, size = 0x4, scoped, tag = 'scoped memory for tpu_custom_call.1']
    #allocation5 [shape = 'u8[4096]{0}', space=vmem, size = 0x1000, scoped, tag = 'input window, operand 1, single buffered']
    #allocation6 [shape = 's32[1]{0}', space=sflag, size = 0x4, scoped, tag = 'scoped memory for tpu_custom_call.1']
    #allocation7 [shape = 'u8[4096]{0}', space=vmem, size = 0x1000, scoped, tag = 'input window, operand 2, single buffered']
    #allocation8 [shape = 'u8[8192]{0}', space=vmem, size = 0x2000, scoped, tag = 'output window, operand 0, single buffered']
    %8 = vsyncpa [#allocation3], 0
    %9 = vsyncpa [#allocation6], 0
    %10 = vsyncpa [#allocation4], 0
    // Predicated region
    $region2: #{tpu_custom_call.1} parent=1 // pred_check
      _
    $region3: #{tpu_custom_call.1} parent=1 // pred_check_branch
      %12 = sbr.rel (0) target = $region5
    $region4: #{tpu_custom_call.1} parent=1 // pred_region
      %s14 = ssub.s32 256, 256
      %15 = vsyncadd [#allocation3], %s14
      %s17 = sshll.u32 [#allocation2], 4
      %s18 = int_to_ptr.vmem [resolvable:$true] %s17
      %20 = dma.hbm_to_vmem [thread:$0]  %s0, 256, %s18, [#allocation3]
    $region5: #{tpu_custom_call.1} parent=1 // pred_fallthru
      _
    // Predicated region
    $region6: #{tpu_custom_call.1} parent=1 // pred_check
      _
    $region7: #{tpu_custom_call.1} parent=1 // pred_check_branch
      %22 = sbr.rel (0) target = $region9
    $region8: #{tpu_custom_call.1} parent=1 // pred_region
      %s24 = ssub.s32 128, 128
      %25 = vsyncadd [#allocation6], %s24
      %s27 = sshll.u32 [#allocation5], 4
      %s28 = int_to_ptr.vmem [resolvable:$true] %s27
      %30 = dma.hbm_to_vmem [thread:$0]  %s1, 128, %s28, [#allocation6]
    $region9: #{tpu_custom_call.1} parent=1 // pred_fallthru
      _
    // Predicated region
    $region10: #{tpu_custom_call.1} parent=1 // pred_check
      _
    $region11: #{tpu_custom_call.1} parent=1 // pred_check_branch
      %32 = sbr.rel (0) target = $region13
    $region12: #{tpu_custom_call.1} parent=1 // pred_region
      %s34 = ssub.s32 128, 128
      %35 = vsyncadd [#allocation6], %s34
      %s37 = sshll.u32 [#allocation7], 4
      %s38 = int_to_ptr.vmem [resolvable:$true] %s37
      %40 = dma.hbm_to_vmem [thread:$0]  %s2, 128, %s38, [#allocation6]
    $region13: #{tpu_custom_call.1} parent=1 // pred_fallthru
      _
    // Predicated region
    $region14: #{tpu_custom_call.1} parent=1 // pred_check
      _
    $region15: #{tpu_custom_call.1} parent=1 // pred_check_branch
      %42 = sbr.rel (0) target = $region17
    $region16: #{tpu_custom_call.1} parent=1 // pred_region
      %43 = dma.done [#allocation3], 256
    $region17: #{tpu_custom_call.1} parent=1 // pred_fallthru
      _
    // Predicated region
    $region18: #{tpu_custom_call.1} parent=1 // pred_check
      _
    $region19: #{tpu_custom_call.1} parent=1 // pred_check_branch
      %45 = sbr.rel (0) target = $region21
    $region20: #{tpu_custom_call.1} parent=1 // pred_region
      %46 = dma.done [#allocation6], 128
    $region21: #{tpu_custom_call.1} parent=1 // pred_fallthru
      _
    // Predicated region
    $region22: #{tpu_custom_call.1} parent=1 // pred_check
      _
    $region23: #{tpu_custom_call.1} parent=1 // pred_check_branch
      %48 = sbr.rel (0) target = $region25
    $region24: #{tpu_custom_call.1} parent=1 // pred_region
      %49 = dma.done [#allocation6], 128
    $region25: #{tpu_custom_call.1} parent=1 // pred_fallthru
      _
    %v50 = vld [vmem:[#allocation2] sm:$0xff]
    %v51 = vld [vmem:[#allocation2 + $0x8] sm:$0xff]
    %v52 = vld [vmem:[#allocation5] sm:$0xff]
    %54 = vset.pattern.permute.xlu0 0
    %55 = vperm.xlu0 %54, %v52
    %v56 = vpop.permute.xlu0 %55
    %v58 = vmul.f32 %v50, %v56
    %v59 = vmul.f32 %v51, %v56
    %v60 = vld [vmem:[#allocation7] sm:$0xff]
    %62 = vset.pattern.permute.xlu0 0
    %63 = vperm.xlu0 %62, %v60
    %v64 = vpop.permute.xlu0 %63
    %v66 = vadd.f32 %v58, %v64
    %v67 = vadd.f32 %v59, %v64
    %68 = vst [vmem:[#allocation8] sm:$0xff] %v66
    %69 = vst [vmem:[#allocation8 + $0x8] sm:$0xff] %v67
    // Predicated region
    $region26: #{tpu_custom_call.1} parent=1 // pred_check
      _
    $region27: #{tpu_custom_call.1} parent=1 // pred_check_branch
      %71 = sbr.rel (0) target = $region29
    $region28: #{tpu_custom_call.1} parent=1 // pred_region
      %s73 = ssub.s32 256, 256
      %74 = vsyncadd [#allocation4], %s73
      %s76 = sshll.u32 [#allocation8], 4
      %s77 = int_to_ptr.vmem [resolvable:$true] %s76
      %79 = dma.vmem_to_hbm [thread:$0]  %s77, 256, %s3, [#allocation4]
    $region29: #{tpu_custom_call.1} parent=1 // pred_fallthru
      _
    // Predicated region
    $region30: #{tpu_custom_call.1} parent=1 // pred_check
      _
    $region31: #{tpu_custom_call.1} parent=1 // pred_check_branch
      %81 = sbr.rel (0) target = $region33
    $region32: #{tpu_custom_call.1} parent=1 // pred_region
      %82 = dma.done [#allocation4], 256
    $region33: #{tpu_custom_call.1} parent=1 // pred_fallthru
      _
    %83 = vsyncpa [#allocation3], 1
    %84 = vsyncpa [#allocation6], 1
    %85 = vsyncpa [#allocation4], 1

</llo_original>
